<compile_context>
chip_gen: v5e
topology: v5e:2x2
jax: 0.10.0
libtpu: 0.0.40
codegen_flags: <defaults>
</compile_context>

<pallas_src>
import functools

import jax
import jax.numpy as jnp
from jax.experimental import pallas as pl
from jax.experimental.pallas import tpu as pltpu

_LANES = 128
_SUBLANES = 8
_STRIP_ROWS = 256  # rows per inner accumulation strip (multiple of 8)


def _wbce_partial_kernel(x_ref, t_ref, out_ref, *, block_rows, strip_rows,
                         valid_in_last, needs_mask):
    """One grid step: BCE-with-logits stats on a lane-dense (block_rows, 128) tile,
    strip-mined into (strip_rows, 128) pieces that accumulate into four (8, 128)
    partials, written as one (4, 8, 128) block."""
    n_strips = block_rows // strip_rows

    def fold(v):
        # (strip_rows, 128) -> (8, 128): pure elementwise vreg adds (no XLU).
        return v.reshape(strip_rows // _SUBLANES, _SUBLANES, _LANES).sum(axis=0)

    def tile_stats(x, y, base_row, masked):
        # Numerically stable BCE with logits (log1p form, matches PyTorch).
        l = jnp.maximum(x, 0.0) - x * y + jnp.log1p(jnp.exp(-jnp.abs(x)))
        pos = y == 1.0
        neg = y == 0.0
        if masked:
            # Block-local index compare: only instantiated when padding exists and
            # only executed on the last grid block; no int32 overflow possible.
            row = jax.lax.broadcasted_iota(jnp.int32, x.shape, 0)
            lane = jax.lax.broadcasted_iota(jnp.int32, x.shape, 1)
            valid = (base_row + row) * _LANES + lane < valid_in_last
            pos = jnp.logical_and(pos, valid)
            neg = jnp.logical_and(neg, valid)
        zero = jnp.zeros_like(l)
        one = jnp.ones_like(l)
        # where() also kills any NaN/garbage in masked padding positions.
        return jnp.stack([
            fold(jnp.where(pos, l, zero)),    # sum of loss at positive pixels
            fold(jnp.where(neg, l, zero)),    # sum of loss at negative pixels
            fold(jnp.where(pos, one, zero)),  # positive count
            fold(jnp.where(neg, one, zero)),  # negative count
        ])

    def accumulate(masked):
        if n_strips == 1:
            x = x_ref[...].astype(jnp.float32)
            y = t_ref[...].astype(jnp.float32)
            return tile_stats(x, y, 0, masked)

        def body(s, acc):
            base = pl.multiple_of(s * strip_rows, strip_rows)
            x = x_ref[pl.ds(base, strip_rows), :].astype(jnp.float32)
            y = t_ref[pl.ds(base, strip_rows), :].astype(jnp.float32)
            return acc + tile_stats(x, y, base, masked)

        init = jnp.zeros((4, _SUBLANES, _LANES), jnp.float32)
        return jax.lax.fori_loop(0, n_strips, body, init,
                                 unroll=min(4, n_strips))

    if needs_mask:
        i = pl.program_id(0)
        last = pl.num_programs(0) - 1

        @pl.when(i != last)
        def _():
            out_ref[0] = accumulate(masked=False)

        @pl.when(i == last)
        def _():
            out_ref[0] = accumulate(masked=True)
    else:
        out_ref[0] = accumulate(masked=False)


@functools.partial(jax.jit, static_argnames=("max_block_rows",))
def weighted_bce(bd_pre, target, max_block_rows=4096):
    """bd_pre: (N, C, H, W) logits (f32 or bf16); target: same numel, values in {0,1}
    (other values get weight 0, exactly like the PyTorch module; int8/uint8/bf16
    targets are streamed as-is and upcast in-kernel). Returns an f32 scalar."""
    n, c, h, w = bd_pre.shape
    total = n * c * h * w

    t_flat = target.reshape(-1)
    if t_flat.shape[0] != total:
        raise ValueError("target must have the same number of elements as bd_pre")

    if c == 1:
        # NHWC == NCHW for a single channel: plain reshape, zero-copy.
        x_flat = bd_pre.reshape(-1)
    else:
        # Faithful to the PyTorch module: logits flattened in NHWC order while the
        # target is flattened in its native order (this pairing is part of the spec,
        # so the transpose copy is kept for c > 1 only).
        x_flat = jnp.transpose(bd_pre, (0, 2, 3, 1)).reshape(-1)

    # Lane alignment only: pad to a multiple of 128 (and at least one (8,128) tile)
    # only when needed.  Realistic image sizes hit the zero-copy path (no extra HBM pass).
    padded = pl.cdiv(total, _LANES) * _LANES
    padded = max(padded, _SUBLANES * _LANES)
    if padded != total:
        x_flat = jnp.pad(x_flat, (0, padded - total))
        t_flat = jnp.pad(t_flat, (0, padded - total))

    rows = padded // _LANES
    x2 = x_flat.reshape(rows, _LANES)
    t2 = t_flat.reshape(rows, _LANES)

    # Block sizing: large blocks amortize the ~0.35us/step overhead, capped so there
    # are >=2 grid blocks (both v7x TensorCores get work) and rounded to the strip
    # granularity used by the in-kernel accumulation loop.
    if rows <= _SUBLANES:
        block_rows = _SUBLANES
    else:
        br = min(max_block_rows, pl.cdiv(rows, 2))
        if br >= _STRIP_ROWS:
            block_rows = (br // _STRIP_ROWS) * _STRIP_ROWS
        else:
            block_rows = pl.cdiv(br, _SUBLANES) * _SUBLANES
    strip_rows = min(_STRIP_ROWS, block_rows)
    num_blocks = pl.cdiv(rows, block_rows)

    needs_mask = (num_blocks * block_rows * _LANES) != total
    valid_in_last = total - (num_blocks - 1) * block_rows * _LANES  # static Python int

    kernel = functools.partial(
        _wbce_partial_kernel,
        block_rows=block_rows,
        strip_rows=strip_rows,
        valid_in_last=valid_in_last,
        needs_mask=needs_mask,
    )

    # Double-buffered input footprint + headroom for accumulators / tiny output.
    in_bytes = block_rows * _LANES * (
        jnp.dtype(x2.dtype).itemsize + jnp.dtype(t2.dtype).itemsize)
    vmem_limit = int(min(2 * in_bytes + (8 << 20), 60 << 20))

    parts = pl.pallas_call(
        kernel,
        out_shape=jax.ShapeDtypeStruct((num_blocks, 4, _SUBLANES, _LANES), jnp.float32),
        grid_spec=pltpu.PrefetchScalarGridSpec(
            num_scalar_prefetch=0,
            grid=(num_blocks,),
            in_specs=[
                pl.BlockSpec((block_rows, _LANES), lambda i: (i, 0)),
                pl.BlockSpec((block_rows, _LANES), lambda i: (i, 0)),
            ],
            out_specs=pl.BlockSpec((1, 4, _SUBLANES, _LANES), lambda i: (i, 0, 0, 0)),
        ),
        compiler_params=pltpu.CompilerParams(
            # Disjoint per-block outputs -> grid stays "parallel" (both TCs on v7x).
            dimension_semantics=("parallel",),
            vmem_limit_bytes=vmem_limit,
        ),
    )(x2, t2)

    # Tiny final combine on (num_blocks, 4, 8, 128) partials.
    sums = jnp.sum(parts, axis=(0, 2, 3))  # (4,)
    s_pos, s_neg, pos_num, neg_num = sums[0], sums[1], sums[2], sums[3]
    sum_num = pos_num + neg_num
    numer = neg_num * s_pos + pos_num * s_neg
    denom = jnp.where(sum_num > 0, sum_num, 1.0) * jnp.float32(total)
    # PyTorch: if there are no 0/1 targets the weight stays all-zero -> loss 0.
    return jnp.where(sum_num > 0, numer / denom, jnp.float32(0.0))


def _reference_loss(bd_pre, target):
    """Pure-JAX mirror of the PyTorch module (weighted BCEWithLogits, mean)."""
    log_p = jnp.transpose(bd_pre, (0, 2, 3, 1)).reshape(-1).astype(jnp.float32)
    t = target.reshape(-1).astype(jnp.float32)
    pos = t == 1.0
    neg = t == 0.0
    pos_num = jnp.sum(pos).astype(jnp.float32)
    neg_num = jnp.sum(neg).astype(jnp.float32)
    sum_num = pos_num + neg_num
    w = jnp.zeros_like(log_p)
    w = jnp.where(pos, neg_num / sum_num, w)
    w = jnp.where(neg, pos_num / sum_num, w)
    l = jnp.maximum(log_p, 0.0) - log_p * t + jnp.log1p(jnp.exp(-jnp.abs(log_p)))
    return jnp.mean(w * l)


if __name__ == "__main__":
    key = jax.random.PRNGKey(0)
    k1, k2, k3, k4 = jax.random.split(key, 4)

    # Multi-channel logits + binary targets: exercises the NHWC/NCHW pairing of the
    # original module and the unmasked multi-block parallel path.
    N, C, H, W = 2, 4, 16, 16
    bd_pre = jax.random.normal(k1, (N, C, H, W), dtype=jnp.float32)
    target = (jax.random.uniform(k2, (N, C, H, W)) > 0.7).astype(jnp.float32)
    loss = jax.block_until_ready(weighted_bce(bd_pre, target))
    ref = jax.block_until_ready(_reference_loss(bd_pre, target))
    assert jnp.allclose(loss, ref, atol=1e-5, rtol=1e-5), (loss, ref)

    # Single-channel, lane-unaligned case: exercises the c==1 zero-transpose path
    # and the masked-last-block path.
    bd2 = jax.random.normal(k3, (1, 1, 10, 100), dtype=jnp.float32)
    tg2 = (jax.random.uniform(k4, (1, 1, 10, 100)) > 0.5).astype(jnp.float32)
    loss2 = jax.block_until_ready(weighted_bce(bd2, tg2))
    ref2 = jax.block_until_ready(_reference_loss(bd2, tg2))
    assert jnp.allclose(loss2, ref2, atol=1e-5, rtol=1e-5), (loss2, ref2)

    print("KERNEL_OK")
</pallas_src>

<mosaic_0001>
module attributes {stable_mosaic.version = 11 : i64} {
  func.func @_wbce_partial_kernel(%arg0: i32, %arg1: memref<8x128xf32, #tpu.memory_space<vmem>>, %arg2: memref<8x128xf32, #tpu.memory_space<vmem>>, %arg3: memref<1x4x8x128xf32, #tpu.memory_space<vmem>>) attributes {dimension_semantics = [#tpu.dimension_semantics<parallel>], iteration_bounds = array<i64: 2>, scalar_prefetch = 0 : i64, scratch_operands = 0 : i64, tpu.core_type = #tpu.core_type<tc>, window_params = [{transform_indices = @transform_0, window_bounds = array<i64: 8, 128>}, {transform_indices = @transform_1, window_bounds = array<i64: 8, 128>}, {transform_indices = @transform_2, window_bounds = array<i64: 1, 4, 8, 128>}]} {
    %c0 = arith.constant 0 : index
    %c0_0 = arith.constant 0 : index
    %0 = vector.load %arg1[%c0, %c0_0] : memref<8x128xf32, #tpu.memory_space<vmem>>, vector<8x128xf32>
    %c0_1 = arith.constant 0 : index
    %c0_2 = arith.constant 0 : index
    %1 = vector.load %arg2[%c0_1, %c0_2] : memref<8x128xf32, #tpu.memory_space<vmem>>, vector<8x128xf32>
    %cst = arith.constant 0.000000e+00 : f32
    %2 = vector.broadcast %cst : f32 to vector<8x128xf32>
    %3 = arith.maximumf %0, %2 : vector<8x128xf32>
    %4 = arith.mulf %0, %1 : vector<8x128xf32>
    %5 = arith.subf %3, %4 : vector<8x128xf32>
    %6 = math.absf %0 : vector<8x128xf32>
    %cst_3 = arith.constant 0.000000e+00 : f32
    %7 = vector.broadcast %cst_3 : f32 to vector<8x128xf32>
    %8 = arith.subf %7, %6 : vector<8x128xf32>
    %9 = math.exp %8 : vector<8x128xf32>
    %10 = math.log1p %9 : vector<8x128xf32>
    %11 = arith.addf %5, %10 : vector<8x128xf32>
    %cst_4 = arith.constant 1.000000e+00 : f32
    %12 = vector.broadcast %cst_4 : f32 to vector<8x128xf32>
    %13 = arith.cmpf oeq, %1, %12 : vector<8x128xf32>
    %cst_5 = arith.constant 0.000000e+00 : f32
    %14 = vector.broadcast %cst_5 : f32 to vector<8x128xf32>
    %15 = arith.cmpf oeq, %1, %14 : vector<8x128xf32>
    %cst_6 = arith.constant 0.000000e+00 : f32
    %16 = vector.broadcast %cst_6 : f32 to vector<8x128xf32>
    %cst_7 = arith.constant 1.000000e+00 : f32
    %17 = vector.broadcast %cst_7 : f32 to vector<8x128xf32>
    %18 = arith.select %13, %11, %16 : vector<8x128xi1>, vector<8x128xf32>
    %19 = vector.shape_cast %18 : vector<8x128xf32> to vector<1x8x128xf32>
    %cst_8 = arith.constant dense<0.000000e+00> : vector<8x128xf32>
    %20 = vector.multi_reduction <add>, %19, %cst_8 [0] : vector<1x8x128xf32> to vector<8x128xf32>
    %21 = arith.select %15, %11, %16 : vector<8x128xi1>, vector<8x128xf32>
    %22 = vector.shape_cast %21 : vector<8x128xf32> to vector<1x8x128xf32>
    %cst_9 = arith.constant dense<0.000000e+00> : vector<8x128xf32>
    %23 = vector.multi_reduction <add>, %22, %cst_9 [0] : vector<1x8x128xf32> to vector<8x128xf32>
    %24 = arith.select %13, %17, %16 : vector<8x128xi1>, vector<8x128xf32>
    %25 = vector.shape_cast %24 : vector<8x128xf32> to vector<1x8x128xf32>
    %cst_10 = arith.constant dense<0.000000e+00> : vector<8x128xf32>
    %26 = vector.multi_reduction <add>, %25, %cst_10 [0] : vector<1x8x128xf32> to vector<8x128xf32>
    %27 = arith.select %15, %17, %16 : vector<8x128xi1>, vector<8x128xf32>
    %28 = vector.shape_cast %27 : vector<8x128xf32> to vector<1x8x128xf32>
    %cst_11 = arith.constant dense<0.000000e+00> : vector<8x128xf32>
    %29 = vector.multi_reduction <add>, %28, %cst_11 [0] : vector<1x8x128xf32> to vector<8x128xf32>
    %30 = vector.shape_cast %20 : vector<8x128xf32> to vector<1x8x128xf32>
    %31 = vector.shape_cast %23 : vector<8x128xf32> to vector<1x8x128xf32>
    %32 = vector.shape_cast %26 : vector<8x128xf32> to vector<1x8x128xf32>
    %33 = vector.shape_cast %29 : vector<8x128xf32> to vector<1x8x128xf32>
    %34 = tpu.concatenate %30, %31, %32, %33 in 0 : vector<1x8x128xf32>, vector<1x8x128xf32>, vector<1x8x128xf32>, vector<1x8x128xf32> -> vector<4x8x128xf32>
    %c0_12 = arith.constant 0 : index
    %c0_13 = arith.constant 0 : index
    %c0_14 = arith.constant 0 : index
    %c0_15 = arith.constant 0 : index
    %35 = vector.load %arg3[%c0_12, %c0_13, %c0_14, %c0_15] : memref<1x4x8x128xf32, #tpu.memory_space<vmem>>, vector<1x4x8x128xf32>
    %36 = vector.shape_cast %35 : vector<1x4x8x128xf32> to vector<4x8x128xf32>
    %37 = vector.shape_cast %34 : vector<4x8x128xf32> to vector<1x4x8x128xf32>
    tpu.vector_store %arg3[%c0_12, %c0_13, %c0_14, %c0_15], %37 {strides = array<i32>} : memref<1x4x8x128xf32, #tpu.memory_space<vmem>>, vector<1x4x8x128xf32>,
    return
  }
  func.func @transform_0(%arg0: i32) -> (i32, i32) {
    %c0_i32 = arith.constant 0 : i32
    %c0_i32_0 = arith.constant 0 : i32
    return %arg0, %c0_i32 : i32, i32
  }
  func.func @transform_1(%arg0: i32) -> (i32, i32) {
    %c0_i32 = arith.constant 0 : i32
    %c0_i32_0 = arith.constant 0 : i32
    return %arg0, %c0_i32 : i32, i32
  }
  func.func @transform_2(%arg0: i32) -> (i32, i32, i32, i32) {
    %c0_i32 = arith.constant 0 : i32
    %c0_i32_0 = arith.constant 0 : i32
    %c0_i32_1 = arith.constant 0 : i32
    %c0_i32_2 = arith.constant 0 : i32
    return %arg0, %c0_i32, %c0_i32_0, %c0_i32_1 : i32, i32, i32, i32
  }
}

</mosaic_0001>

<llo_original>
// kernel: weighted_bce.1
$region0: #{weighted_bce.1}
  #allocation0 [shape = 'u32[]', space=smem, size = 0x4, offset = 0x4, fixed_abs, tag = 'smem constant byte address 0x4 - core index']
  #allocation1 [shape = 'u32[72,128]{1,0:T(1,128)}', space=vmem, size = 0x9000, scoped, tag = 'internal scratch']
  %s0 = inlined_call_operand.vmem [shape: f32[16,128], index: 0, kind: input, shape index: {}]
  %s1 = inlined_call_operand.vmem [shape: f32[16,128], index: 1, kind: input, shape index: {}]
  %s2 = inlined_call_operand.vmem [shape: f32[2,4,8,128], index: 2, kind: output, shape index: {}]
  %s3 = sld [smem:[#allocation0]]
  $region41: #{weighted_bce.1} parent=0
    _
  %s5 = ssub.s32 1, %s3
  %s6 = scalar_select 0, %s5, %s3
  loop: start=0, step=1, limit=4
  $region2: #{weighted_bce.1} parent=0 // loop_pre_header
    _
  $region3: #{weighted_bce.1} parent=0 // loop_header
    %s8 = sphi 0, %s12
    %p9 = scmp.ge.s32.totalorder %s8, 4
    %s18 = sphi 0, %s20
    %s21 = sphi 0, %s18
    %s22 = sphi 0, %s21
    %s38 = sphi 0, %s22
    %s44 = sphi 0, %s46
    %s47 = sphi 0, %s44
    %s48 = sphi 0, %s47
    %s64 = sphi 0, %s48
    %s70 = sphi 0, %s72
    %s73 = sphi 0, %s70
    %s74 = sphi 0, %s73
    %s90 = sphi 0, %s74
  $region4: #{weighted_bce.1} parent=0 // loop_header_branch
    %11 = sbr.rel (%p9) target = $region8
  $region5: #{weighted_bce.1} parent=0 // loop_body
    %s13 = ssub.s32 %s8, 1
    %s14 = ssub.s32 %s8, 2
    %s15 = sadd.s32 %s8, 1
    %s16 = ssub.s32 %s8, %s15
    %p17 = scmp.eq.s32.totalorder %s16, 0
    %s19 = sadd.s32 %s18, 1
    %s20 = scalar_select %p17, %s18, %s19
    %p23 = pneg %p17
    %p24 = scmp.eq.s32.totalorder %s8, 1
    %p25 = por %p23, %p24
    %p26 = scmp.ne.s32.totalorder %s18, %s21
    %p27 = scmp.eq.s32.totalorder %s8, 0
    %p28 = por %p26, %p27
    %p29 = scmp.ne.s32.totalorder %s18, %s21
    %p30 = scmp.eq.s32.totalorder %s13, 1
    %p31 = por %p29, %p30
    %p32 = scmp.ne.s32.totalorder %s21, %s22
    %p33 = scmp.eq.s32.totalorder %s13, 0
    %p34 = por %p32, %p33
    %p35 = scmp.ne.s32.totalorder %s21, %s22
    %p36 = scmp.eq.s32.totalorder %s14, 1
    %p37 = por %p35, %p36
    %p39 = scmp.ne.s32.totalorder %s22, %s38
    %p40 = scmp.eq.s32.totalorder %s14, 0
    %p41 = por %p39, %p40
    %s42 = ssub.s32 %s8, %s15
    %p43 = scmp.eq.s32.totalorder %s42, 0
    %s45 = sadd.s32 %s44, 1
    %s46 = scalar_select %p43, %s44, %s45
    %p49 = pneg %p43
    %p50 = scmp.eq.s32.totalorder %s8, 1
    %p51 = por %p49, %p50
    %p52 = scmp.ne.s32.totalorder %s44, %s47
    %p53 = scmp.eq.s32.totalorder %s8, 0
    %p54 = por %p52, %p53
    %p55 = scmp.ne.s32.totalorder %s44, %s47
    %p56 = scmp.eq.s32.totalorder %s13, 1
    %p57 = por %p55, %p56
    %p58 = scmp.ne.s32.totalorder %s47, %s48
    %p59 = scmp.eq.s32.totalorder %s13, 0
    %p60 = por %p58, %p59
    %p61 = scmp.ne.s32.totalorder %s47, %s48
    %p62 = scmp.eq.s32.totalorder %s14, 1
    %p63 = por %p61, %p62
    %p65 = scmp.ne.s32.totalorder %s48, %s64
    %p66 = scmp.eq.s32.totalorder %s14, 0
    %p67 = por %p65, %p66
    %s68 = ssub.s32 %s8, %s15
    %p69 = scmp.eq.s32.totalorder %s68, 0
    %s71 = sadd.s32 %s70, 1
    %s72 = scalar_select %p69, %s70, %s71
    %p75 = pneg %p69
    %p76 = scmp.eq.s32.totalorder %s8, 1
    %p77 = por %p75, %p76
    %p78 = scmp.ne.s32.totalorder %s70, %s73
    %p79 = scmp.eq.s32.totalorder %s8, 0
    %p80 = por %p78, %p79
    %p81 = scmp.ne.s32.totalorder %s70, %s73
    %p82 = scmp.eq.s32.totalorder %s13, 1
    %p83 = por %p81, %p82
    %p84 = scmp.ne.s32.totalorder %s73, %s74
    %p85 = scmp.eq.s32.totalorder %s13, 0
    %p86 = por %p84, %p85
    %p87 = scmp.ne.s32.totalorder %s73, %s74
    %p88 = scmp.eq.s32.totalorder %s14, 1
    %p89 = por %p87, %p88
    %p91 = scmp.ne.s32.totalorder %s74, %s90
    %p92 = scmp.eq.s32.totalorder %s14, 0
    %p93 = por %p91, %p92
    %p94 = scmp.le.s32.totalorder 1, %s8
    %p95 = scmp.lt.s32.totalorder %s8, 3
    %p96 = pnand %p94, %p95
    %p97 = pneg %p96
    // Predicated region
    $region9: #{weighted_bce.1} parent=5 // pred_check
      _
    $region10: #{weighted_bce.1} parent=5 // pred_check_branch
      %99 = sbr.rel (%p96) target = $region12
    $region11: #{weighted_bce.1} parent=5 // pred_region
      %s100 = ssub.s32 %s8, 1
    $region12: #{weighted_bce.1} parent=5 // pred_fallthru
      _
    %p101 = scmp.lt.s32.totalorder %s8, 2
    // Predicated region
    $region13: #{weighted_bce.1} parent=5 // pred_check
      %p102 = pneg %p101
    $region14: #{weighted_bce.1} parent=5 // pred_check_branch
      %104 = sbr.rel (%p102) target = $region16
    $region15: #{weighted_bce.1} parent=5 // pred_region
      // Predicated region
      $region17: #{weighted_bce.1} parent=15 // pred_check
        %p105 = pneg %p28
      $region18: #{weighted_bce.1} parent=15 // pred_check_branch
        %107 = sbr.rel (%p105) target = $region20
      $region19: #{weighted_bce.1} parent=15 // pred_region
        %p108 = scmp.lt.s32.totalorder %s8, 1
        %s109 = scalar_select %p108, %s8, 1
        %s110 = smul.addr %s109, 8
        %s111 = scalar_lea.vmem %s0, %s110
      $region20: #{weighted_bce.1} parent=15 // pred_fallthru
        _
      // Predicated region
      $region21: #{weighted_bce.1} parent=15 // pred_check
        %p112 = pneg %p54
      $region22: #{weighted_bce.1} parent=15 // pred_check_branch
        %114 = sbr.rel (%p112) target = $region24
      $region23: #{weighted_bce.1} parent=15 // pred_region
        %p115 = scmp.lt.s32.totalorder %s8, 1
        %s116 = scalar_select %p115, %s8, 1
        %s117 = smul.addr %s116, 8
        %s118 = scalar_lea.vmem %s1, %s117
      $region24: #{weighted_bce.1} parent=15 // pred_fallthru
        _
    $region16: #{weighted_bce.1} parent=5 // pred_fallthru
      _
    %p119 = scmp.le.s32.totalorder 1, %s8
    %p120 = scmp.lt.s32.totalorder %s8, 3
    %p121 = pnand %p119, %p120
    %p122 = pneg %p121
    // Predicated region
    $region25: #{weighted_bce.1} parent=5 // pred_check
      _
    $region26: #{weighted_bce.1} parent=5 // pred_check_branch
      %124 = sbr.rel (%p121) target = $region28
    $region27: #{weighted_bce.1} parent=5 // pred_region
      %s125 = ssub.s32 %s8, 1
      %p126 = scmp.lt.s32.totalorder %s13, 1
      %s127 = scalar_select %p126, %s13, 1
      %s128 = smul.addr %s127, 8
      %s129 = scalar_lea.vmem %s0, %s128
      %p130 = pneg %p34
      %p131 = pneg %p31
      %p132 = scmp.lt.s32.totalorder %s13, 1
      %s133 = scalar_select %p132, %s13, 1
      %s134 = smul.addr %s133, 8
      %s135 = scalar_lea.vmem %s1, %s134
      %p136 = pneg %p60
      %p137 = pneg %p57
      %p138 = pneg %p86
      %p139 = pneg %p83
      %p140 = scmp.lt.s32.totalorder %s13, 1
      %s141 = scalar_select %p140, %s13, 1
      %s142 = smul.addr %s141, 4
      %s143 = smul.addr %s142, 8
      %s144 = scalar_lea.vmem %s2, %s143
      %p145 = scmp.lt.s32.totalorder %s13, 1
      %s146 = scalar_select %p145, %s13, 1
      %s147 = smul.addr %s146, 8
      %s148 = scalar_lea.vmem %s0, %s147
      %p149 = scmp.lt.s32.totalorder %s13, 1
      %s150 = scalar_select %p149, %s13, 1
      %s151 = smul.addr %s150, 8
      %s152 = scalar_lea.vmem %s1, %s151
      %p153 = scmp.lt.s32.totalorder %s13, 1
      %s154 = scalar_select %p153, %s13, 1
      %s155 = smul.addr %s154, 4
      %s156 = smul.addr %s155, 8
      %s157 = scalar_lea.vmem %s2, %s156
      %v158 = vld [vmem:[%s148] sm:$0xff]
      %v159 = vld [vmem:[%s152] sm:$0xff]
      %v160 = vmax.f32 %v158, 0.0
      %v161 = vmul.f32 %v158, %v159
      %v162 = vsub.f32 %v160, %v161
      %v163 = vand.u32 2147483647, %v158
      %v164 = vsub.f32 0.0, %v163
      %v165 = vmul.f32 %v164, 1.442695
      %v166 = vpow.pop %v165
      %v167 = vadd.f32 %v166, 1.0
      %v168 = vlog2.pop %v167
      %v169 = vmul.f32 %v168, 0.6931472
      %v170 = vmul.f32 -0.5, %v166
      %v171 = vadd.f32 %v170, 1.0
      %v172 = vmul.f32 %v171, %v166
      %v173 = vand.u32 2147483647, %v166
      %vm174 = vcmp.lt.f32.partialorder %v173, 0.0004427343
      %v175 = vsel %vm174, %v172, %v169
      %v176 = vadd.f32 %v162, %v175
      %vm177 = vcmp.eq.f32.partialorder %v159, 1.0
      %vm178 = vcmp.eq.f32.partialorder %v159, 0.0
      %v179 = vsel %vm177, %v176, 0.0
      %v180 = vadd.f32 %v179, 0.0
      %v181 = vsel %vm178, %v176, 0.0
      %v182 = vadd.f32 %v181, 0.0
      %v183 = vsel %vm177, 1.0, 0.0
      %v184 = vadd.f32 %v183, 0.0
      %v185 = vsel %vm178, 1.0, 0.0
      %v186 = vadd.f32 %v185, 0.0
      %187 = vst [vmem:[%s157] sm:$0xff] %v180
      %188 = vst [vmem:[%s157 + $0x8] sm:$0xff] %v182
      %189 = vst [vmem:[%s157 + $0x10] sm:$0xff] %v184
      %190 = vst [vmem:[%s157 + $0x18] sm:$0xff] %v186
      %p191 = scmp.lt.s32.totalorder %s13, 1
      %s192 = scalar_select %p191, %s13, 1
      %s193 = smul.addr %s192, 4
      %s194 = smul.addr %s193, 8
      %s195 = scalar_lea.vmem %s2, %s194
      // Predicated region
      $region29: #{weighted_bce.1} parent=27 // pred_check
        %p196 = pneg %p83
      $region30: #{weighted_bce.1} parent=27 // pred_check_branch
        %198 = sbr.rel (%p196) target = $region32
      $region31: #{weighted_bce.1} parent=27 // pred_region
        _
      $region32: #{weighted_bce.1} parent=27 // pred_fallthru
        _
    $region28: #{weighted_bce.1} parent=5 // pred_fallthru
      _
    %p199 = scmp.le.s32.totalorder 2, %s8
    // Predicated region
    $region33: #{weighted_bce.1} parent=5 // pred_check
      %p200 = pneg %p199
    $region34: #{weighted_bce.1} parent=5 // pred_check_branch
      %202 = sbr.rel (%p200) target = $region36
    $region35: #{weighted_bce.1} parent=5 // pred_region
      %s203 = ssub.s32 %s8, 2
      // Predicated region
      $region37: #{weighted_bce.1} parent=35 // pred_check
        %p204 = pneg %p89
      $region38: #{weighted_bce.1} parent=35 // pred_check_branch
        %206 = sbr.rel (%p204) target = $region40
      $region39: #{weighted_bce.1} parent=35 // pred_region
        %p207 = scmp.lt.s32.totalorder %s14, 1
        %s208 = scalar_select %p207, %s14, 1
        %s209 = smul.addr %s208, 4
        %s210 = smul.addr %s209, 8
        %s211 = scalar_lea.vmem %s2, %s210
      $region40: #{weighted_bce.1} parent=35 // pred_fallthru
        _
    $region36: #{weighted_bce.1} parent=5 // pred_fallthru
      _
  $region6: #{weighted_bce.1} parent=0 // loop_footer
    %s12 = sadd.s32 1, %s8
  $region7: #{weighted_bce.1} parent=0 // loop_footer_branch
    %7 = sbr.rel target = $region3
  $region8: #{weighted_bce.1} parent=0 // loop_exit
    _

</llo_original>
